<compile_context>
chip_gen: v6e
topology: v6e:2x2x1
jax: 0.10.0
libtpu: 0.0.40
codegen_flags: <defaults>
</compile_context>

<pallas_src>
import functools

import jax
import jax.numpy as jnp
from jax import lax
from jax.experimental import pallas as pl
from jax.experimental.pallas import tpu as pltpu


def _rnn_fc_kernel(x_ref,        # (T*B_pad, D)  concatenated input, time-major
                   wih_t_ref,    # (D, H)   W_ih^T
                   brnn_ref,     # (1, H)   b_ih + b_hh (pre-combined)
                   whh_t_ref,    # (H, H)   W_hh^T
                   wfc_t_ref,    # (H, D)   W_fc^T
                   bfc_ref,      # (1, D)
                   o_ref,        # (T*B_pad, D)
                   pre_ref,      # (T*B_pad, H) scratch: hoisted input projection
                   hs_ref,       # (T*B_pad, H) scratch: all hidden states
                   *, T, B_pad):
    # Hoisted input projection: one well-shaped MXU matmul, bias added once.
    pre_ref[...] = (
        jnp.dot(x_ref[...], wih_t_ref[...], preferred_element_type=jnp.float32)
        + brnn_ref[...])

    # Serial recurrence: only tanh(pre[t] + h @ W_hh^T) stays on the critical
    # path (MXU -> VPU add -> EUP tanh).
    def step(t, h):
        r = pl.multiple_of(t * B_pad, 8)
        h = jnp.tanh(pre_ref[pl.ds(r, B_pad), :]
                     + jnp.dot(h, whh_t_ref[...],
                               preferred_element_type=jnp.float32))
        hs_ref[pl.ds(r, B_pad), :] = h
        return h

    h0 = jnp.zeros((B_pad, whh_t_ref.shape[0]), jnp.float32)  # PyTorch h_0 = 0
    lax.fori_loop(0, T, step, h0, unroll=min(T, 8))

    # Hoisted fc projection: one matmul + bias + one contiguous store.
    o_ref[...] = (
        jnp.dot(hs_ref[...], wfc_t_ref[...], preferred_element_type=jnp.float32)
        + bfc_ref[...]).astype(o_ref.dtype)


@jax.jit
def df_model_forward(zt_prev, xt_noisy, kp):
    """Equivalent of DFModel.forward (batch_first). Returns (B, T, input_dim).

    `kp` is the kernel-layout parameter dict from `prepare_params`.
    """
    x = jnp.concatenate([zt_prev, xt_noisy], axis=-1).astype(jnp.float32)  # (B,T,D)
    B, T, D = x.shape
    H = kp["w_hh_t"].shape[0]

    # Pad batch to a multiple of 8 so every per-step row block is sublane-aligned.
    B_pad = ((B + 7) // 8) * 8
    x_tm = jnp.transpose(x, (1, 0, 2))                       # (T, B, D) time-major
    if B_pad != B:
        x_tm = jnp.pad(x_tm, ((0, 0), (0, B_pad - B), (0, 0)))
    x_flat = x_tm.reshape(T * B_pad, D)                      # (T*B_pad, D)

    vmem = pl.BlockSpec(memory_space=pltpu.MemorySpace.VMEM)
    out_flat = pl.pallas_call(
        functools.partial(_rnn_fc_kernel, T=T, B_pad=B_pad),
        out_shape=jax.ShapeDtypeStruct((T * B_pad, D), jnp.float32),
        in_specs=[vmem] * 6,
        out_specs=vmem,
        scratch_shapes=[pltpu.VMEM((T * B_pad, H), jnp.float32),
                        pltpu.VMEM((T * B_pad, H), jnp.float32)],
    )(x_flat, kp["w_ih_t"], kp["b_rnn"], kp["w_hh_t"], kp["w_fc_t"], kp["b_fc"])

    out = out_flat.reshape(T, B_pad, D)[:, :B, :]            # drop batch padding
    return jnp.transpose(out, (1, 0, 2))                     # back to (B, T, D)


def init_params(key, input_dim, hidden_dim):
    """Deterministic init mirroring PyTorch's U(-1/sqrt(H), 1/sqrt(H)) defaults."""
    ks = jax.random.split(key, 6)
    bound = 1.0 / jnp.sqrt(jnp.float32(hidden_dim))

    def u(k, shape, b):
        return jax.random.uniform(k, shape, jnp.float32, minval=-b, maxval=b)

    return {
        "w_ih": u(ks[0], (hidden_dim, input_dim), bound),    # RNN weight_ih_l0
        "b_ih": u(ks[1], (hidden_dim,), bound),
        "w_hh": u(ks[2], (hidden_dim, hidden_dim), bound),   # RNN weight_hh_l0
        "b_hh": u(ks[3], (hidden_dim,), bound),
        "w_fc": u(ks[4], (input_dim, hidden_dim), bound),    # fc: Linear(H, D_in)
        "b_fc": u(ks[5], (input_dim,), bound),
    }


def prepare_params(p):
    """One-time conversion to kernel layout (pre-transposed, biases combined)."""
    H = p["w_hh"].shape[0]
    D = p["w_fc"].shape[0]
    return {
        "w_ih_t": jnp.asarray(p["w_ih"].T, jnp.float32),             # (D, H)
        "w_hh_t": jnp.asarray(p["w_hh"].T, jnp.float32),             # (H, H)
        "w_fc_t": jnp.asarray(p["w_fc"].T, jnp.float32),             # (H, D)
        "b_rnn": (p["b_ih"] + p["b_hh"]).reshape(1, H).astype(jnp.float32),
        "b_fc": p["b_fc"].reshape(1, D).astype(jnp.float32),
    }


def ref_forward(zt_prev, xt_noisy, p):
    """Pure-JAX reference replicating torch semantics (correctness check)."""
    x = jnp.concatenate([zt_prev, xt_noisy], axis=-1)
    B, T, _ = x.shape
    H = p["w_hh"].shape[0]
    h = jnp.zeros((B, H), jnp.float32)
    outs = []
    for t in range(T):
        h = jnp.tanh(x[:, t] @ p["w_ih"].T + p["b_ih"]
                     + h @ p["w_hh"].T + p["b_hh"])
        outs.append(h @ p["w_fc"].T + p["b_fc"])
    return jnp.stack(outs, axis=1)


if __name__ == "__main__":
    # DFModel(input_dim=4, hidden_dim=32); zt_prev / xt_noisy each carry
    # input_dim/2 = 2 features so their concat has width input_dim.
    input_dim, hidden_dim = 4, 32
    B, T = 2, 8

    key = jax.random.PRNGKey(0)
    k_p, k_z, k_x = jax.random.split(key, 3)
    params = init_params(k_p, input_dim, hidden_dim)
    kparams = prepare_params(params)           # one-time, outside the call path
    zt_prev = jax.random.normal(k_z, (B, T, input_dim // 2), jnp.float32)
    xt_noisy = jax.random.normal(k_x, (B, T, input_dim // 2), jnp.float32)

    out = jax.block_until_ready(df_model_forward(zt_prev, xt_noisy, kparams))

    ref = jax.block_until_ready(ref_forward(zt_prev, xt_noisy, params))
    assert out.shape == (B, T, input_dim)
    assert jnp.allclose(out, ref, atol=1e-5, rtol=1e-5), "mismatch vs reference"

    print("KERNEL_OK")
</pallas_src>

<mosaic_0001>
module attributes {stable_mosaic.version = 11 : i64} {
  func.func @_rnn_fc_kernel(%arg0: memref<64x4xf32, #tpu.memory_space<vmem>>, %arg1: memref<4x32xf32, #tpu.memory_space<vmem>>, %arg2: memref<1x32xf32, #tpu.memory_space<vmem>>, %arg3: memref<32x32xf32, #tpu.memory_space<vmem>>, %arg4: memref<32x4xf32, #tpu.memory_space<vmem>>, %arg5: memref<1x4xf32, #tpu.memory_space<vmem>>, %arg6: memref<64x4xf32, #tpu.memory_space<vmem>>, %arg7: memref<64x32xf32, #tpu.memory_space<vmem>>, %arg8: memref<64x32xf32, #tpu.memory_space<vmem>>) attributes {dimension_semantics = [], scalar_prefetch = 0 : i64, scratch_operands = 2 : i64, tpu.core_type = #tpu.core_type<tc>} {
    %c0 = arith.constant 0 : index
    %c0_0 = arith.constant 0 : index
    %0 = vector.load %arg0[%c0, %c0_0] : memref<64x4xf32, #tpu.memory_space<vmem>>, vector<64x4xf32>
    %c0_1 = arith.constant 0 : index
    %c0_2 = arith.constant 0 : index
    %1 = vector.load %arg1[%c0_1, %c0_2] : memref<4x32xf32, #tpu.memory_space<vmem>>, vector<4x32xf32>
    %cst = arith.constant dense<0.000000e+00> : vector<64x32xf32>
    %2 = tpu.matmul %0, %1, %cst {dimension_numbers = #tpu.dot_dimension_numbers<[1], [0], [0], [1], [0, 0, 1, 1], [], []>} : vector<64x4xf32>, vector<4x32xf32>, vector<64x32xf32> -> vector<64x32xf32>
    %c0_3 = arith.constant 0 : index
    %c0_4 = arith.constant 0 : index
    %3 = vector.load %arg2[%c0_3, %c0_4] : memref<1x32xf32, #tpu.memory_space<vmem>>, vector<1x32xf32>
    %4 = vector.broadcast %3 : vector<1x32xf32> to vector<64x32xf32>
    %5 = arith.addf %2, %4 : vector<64x32xf32>
    %c0_5 = arith.constant 0 : index
    %c0_6 = arith.constant 0 : index
    %6 = vector.load %arg7[%c0_5, %c0_6] : memref<64x32xf32, #tpu.memory_space<vmem>>, vector<64x32xf32>
    tpu.vector_store %arg7[%c0_5, %c0_6], %5 {strides = array<i32>} : memref<64x32xf32, #tpu.memory_space<vmem>>, vector<64x32xf32>,
    %cst_7 = arith.constant 0.000000e+00 : f32
    %7 = vector.broadcast %cst_7 : f32 to vector<8x32xf32>
    %c0_i32 = arith.constant 0 : i32
    %c8_i32 = arith.constant 8 : i32
    %8 = arith.muli %c0_i32, %c8_i32 : i32
    %9 = tpu.assume_multiple %8, 8 : i32
    %10 = arith.index_cast %9 : i32 to index
    %c0_8 = arith.constant 0 : index
    %11 = vector.load %arg7[%10, %c0_8] : memref<64x32xf32, #tpu.memory_space<vmem>>, vector<8x32xf32>
    %c0_9 = arith.constant 0 : index
    %c0_10 = arith.constant 0 : index
    %12 = vector.load %arg3[%c0_9, %c0_10] : memref<32x32xf32, #tpu.memory_space<vmem>>, vector<32x32xf32>
    %cst_11 = arith.constant dense<0.000000e+00> : vector<8x32xf32>
    %13 = tpu.matmul %7, %12, %cst_11 {dimension_numbers = #tpu.dot_dimension_numbers<[1], [0], [0], [1], [0, 0, 1, 1], [], []>} : vector<8x32xf32>, vector<32x32xf32>, vector<8x32xf32> -> vector<8x32xf32>
    %14 = arith.addf %11, %13 : vector<8x32xf32>
    %15 = math.tanh %14 : vector<8x32xf32>
    %16 = arith.index_cast %9 : i32 to index
    %c0_12 = arith.constant 0 : index
    %17 = vector.load %arg8[%16, %c0_12] : memref<64x32xf32, #tpu.memory_space<vmem>>, vector<8x32xf32>
    tpu.vector_store %arg8[%16, %c0_12], %15 {strides = array<i32>} : memref<64x32xf32, #tpu.memory_space<vmem>>, vector<8x32xf32>,
    %c1_i32 = arith.constant 1 : i32
    %c8_i32_13 = arith.constant 8 : i32
    %18 = arith.muli %c1_i32, %c8_i32_13 : i32
    %19 = tpu.assume_multiple %18, 8 : i32
    %20 = arith.index_cast %19 : i32 to index
    %c0_14 = arith.constant 0 : index
    %21 = vector.load %arg7[%20, %c0_14] : memref<64x32xf32, #tpu.memory_space<vmem>>, vector<8x32xf32>
    %c0_15 = arith.constant 0 : index
    %c0_16 = arith.constant 0 : index
    %22 = vector.load %arg3[%c0_15, %c0_16] : memref<32x32xf32, #tpu.memory_space<vmem>>, vector<32x32xf32>
    %cst_17 = arith.constant dense<0.000000e+00> : vector<8x32xf32>
    %23 = tpu.matmul %15, %22, %cst_17 {dimension_numbers = #tpu.dot_dimension_numbers<[1], [0], [0], [1], [0, 0, 1, 1], [], []>} : vector<8x32xf32>, vector<32x32xf32>, vector<8x32xf32> -> vector<8x32xf32>
    %24 = arith.addf %21, %23 : vector<8x32xf32>
    %25 = math.tanh %24 : vector<8x32xf32>
    %26 = arith.index_cast %19 : i32 to index
    %c0_18 = arith.constant 0 : index
    %27 = vector.load %arg8[%26, %c0_18] : memref<64x32xf32, #tpu.memory_space<vmem>>, vector<8x32xf32>
    tpu.vector_store %arg8[%26, %c0_18], %25 {strides = array<i32>} : memref<64x32xf32, #tpu.memory_space<vmem>>, vector<8x32xf32>,
    %c2_i32 = arith.constant 2 : i32
    %c8_i32_19 = arith.constant 8 : i32
    %28 = arith.muli %c2_i32, %c8_i32_19 : i32
    %29 = tpu.assume_multiple %28, 8 : i32
    %30 = arith.index_cast %29 : i32 to index
    %c0_20 = arith.constant 0 : index
    %31 = vector.load %arg7[%30, %c0_20] : memref<64x32xf32, #tpu.memory_space<vmem>>, vector<8x32xf32>
    %c0_21 = arith.constant 0 : index
    %c0_22 = arith.constant 0 : index
    %32 = vector.load %arg3[%c0_21, %c0_22] : memref<32x32xf32, #tpu.memory_space<vmem>>, vector<32x32xf32>
    %cst_23 = arith.constant dense<0.000000e+00> : vector<8x32xf32>
    %33 = tpu.matmul %25, %32, %cst_23 {dimension_numbers = #tpu.dot_dimension_numbers<[1], [0], [0], [1], [0, 0, 1, 1], [], []>} : vector<8x32xf32>, vector<32x32xf32>, vector<8x32xf32> -> vector<8x32xf32>
    %34 = arith.addf %31, %33 : vector<8x32xf32>
    %35 = math.tanh %34 : vector<8x32xf32>
    %36 = arith.index_cast %29 : i32 to index
    %c0_24 = arith.constant 0 : index
    %37 = vector.load %arg8[%36, %c0_24] : memref<64x32xf32, #tpu.memory_space<vmem>>, vector<8x32xf32>
    tpu.vector_store %arg8[%36, %c0_24], %35 {strides = array<i32>} : memref<64x32xf32, #tpu.memory_space<vmem>>, vector<8x32xf32>,
    %c3_i32 = arith.constant 3 : i32
    %c8_i32_25 = arith.constant 8 : i32
    %38 = arith.muli %c3_i32, %c8_i32_25 : i32
    %39 = tpu.assume_multiple %38, 8 : i32
    %40 = arith.index_cast %39 : i32 to index
    %c0_26 = arith.constant 0 : index
    %41 = vector.load %arg7[%40, %c0_26] : memref<64x32xf32, #tpu.memory_space<vmem>>, vector<8x32xf32>
    %c0_27 = arith.constant 0 : index
    %c0_28 = arith.constant 0 : index
    %42 = vector.load %arg3[%c0_27, %c0_28] : memref<32x32xf32, #tpu.memory_space<vmem>>, vector<32x32xf32>
    %cst_29 = arith.constant dense<0.000000e+00> : vector<8x32xf32>
    %43 = tpu.matmul %35, %42, %cst_29 {dimension_numbers = #tpu.dot_dimension_numbers<[1], [0], [0], [1], [0, 0, 1, 1], [], []>} : vector<8x32xf32>, vector<32x32xf32>, vector<8x32xf32> -> vector<8x32xf32>
    %44 = arith.addf %41, %43 : vector<8x32xf32>
    %45 = math.tanh %44 : vector<8x32xf32>
    %46 = arith.index_cast %39 : i32 to index
    %c0_30 = arith.constant 0 : index
    %47 = vector.load %arg8[%46, %c0_30] : memref<64x32xf32, #tpu.memory_space<vmem>>, vector<8x32xf32>
    tpu.vector_store %arg8[%46, %c0_30], %45 {strides = array<i32>} : memref<64x32xf32, #tpu.memory_space<vmem>>, vector<8x32xf32>,
    %c4_i32 = arith.constant 4 : i32
    %c8_i32_31 = arith.constant 8 : i32
    %48 = arith.muli %c4_i32, %c8_i32_31 : i32
    %49 = tpu.assume_multiple %48, 8 : i32
    %50 = arith.index_cast %49 : i32 to index
    %c0_32 = arith.constant 0 : index
    %51 = vector.load %arg7[%50, %c0_32] : memref<64x32xf32, #tpu.memory_space<vmem>>, vector<8x32xf32>
    %c0_33 = arith.constant 0 : index
    %c0_34 = arith.constant 0 : index
    %52 = vector.load %arg3[%c0_33, %c0_34] : memref<32x32xf32, #tpu.memory_space<vmem>>, vector<32x32xf32>
    %cst_35 = arith.constant dense<0.000000e+00> : vector<8x32xf32>
    %53 = tpu.matmul %45, %52, %cst_35 {dimension_numbers = #tpu.dot_dimension_numbers<[1], [0], [0], [1], [0, 0, 1, 1], [], []>} : vector<8x32xf32>, vector<32x32xf32>, vector<8x32xf32> -> vector<8x32xf32>
    %54 = arith.addf %51, %53 : vector<8x32xf32>
    %55 = math.tanh %54 : vector<8x32xf32>
    %56 = arith.index_cast %49 : i32 to index
    %c0_36 = arith.constant 0 : index
    %57 = vector.load %arg8[%56, %c0_36] : memref<64x32xf32, #tpu.memory_space<vmem>>, vector<8x32xf32>
    tpu.vector_store %arg8[%56, %c0_36], %55 {strides = array<i32>} : memref<64x32xf32, #tpu.memory_space<vmem>>, vector<8x32xf32>,
    %c5_i32 = arith.constant 5 : i32
    %c8_i32_37 = arith.constant 8 : i32
    %58 = arith.muli %c5_i32, %c8_i32_37 : i32
    %59 = tpu.assume_multiple %58, 8 : i32
    %60 = arith.index_cast %59 : i32 to index
    %c0_38 = arith.constant 0 : index
    %61 = vector.load %arg7[%60, %c0_38] : memref<64x32xf32, #tpu.memory_space<vmem>>, vector<8x32xf32>
    %c0_39 = arith.constant 0 : index
    %c0_40 = arith.constant 0 : index
    %62 = vector.load %arg3[%c0_39, %c0_40] : memref<32x32xf32, #tpu.memory_space<vmem>>, vector<32x32xf32>
    %cst_41 = arith.constant dense<0.000000e+00> : vector<8x32xf32>
    %63 = tpu.matmul %55, %62, %cst_41 {dimension_numbers = #tpu.dot_dimension_numbers<[1], [0], [0], [1], [0, 0, 1, 1], [], []>} : vector<8x32xf32>, vector<32x32xf32>, vector<8x32xf32> -> vector<8x32xf32>
    %64 = arith.addf %61, %63 : vector<8x32xf32>
    %65 = math.tanh %64 : vector<8x32xf32>
    %66 = arith.index_cast %59 : i32 to index
    %c0_42 = arith.constant 0 : index
    %67 = vector.load %arg8[%66, %c0_42] : memref<64x32xf32, #tpu.memory_space<vmem>>, vector<8x32xf32>
    tpu.vector_store %arg8[%66, %c0_42], %65 {strides = array<i32>} : memref<64x32xf32, #tpu.memory_space<vmem>>, vector<8x32xf32>,
    %c6_i32 = arith.constant 6 : i32
    %c8_i32_43 = arith.constant 8 : i32
    %68 = arith.muli %c6_i32, %c8_i32_43 : i32
    %69 = tpu.assume_multiple %68, 8 : i32
    %70 = arith.index_cast %69 : i32 to index
    %c0_44 = arith.constant 0 : index
    %71 = vector.load %arg7[%70, %c0_44] : memref<64x32xf32, #tpu.memory_space<vmem>>, vector<8x32xf32>
    %c0_45 = arith.constant 0 : index
    %c0_46 = arith.constant 0 : index
    %72 = vector.load %arg3[%c0_45, %c0_46] : memref<32x32xf32, #tpu.memory_space<vmem>>, vector<32x32xf32>
    %cst_47 = arith.constant dense<0.000000e+00> : vector<8x32xf32>
    %73 = tpu.matmul %65, %72, %cst_47 {dimension_numbers = #tpu.dot_dimension_numbers<[1], [0], [0], [1], [0, 0, 1, 1], [], []>} : vector<8x32xf32>, vector<32x32xf32>, vector<8x32xf32> -> vector<8x32xf32>
    %74 = arith.addf %71, %73 : vector<8x32xf32>
    %75 = math.tanh %74 : vector<8x32xf32>
    %76 = arith.index_cast %69 : i32 to index
    %c0_48 = arith.constant 0 : index
    %77 = vector.load %arg8[%76, %c0_48] : memref<64x32xf32, #tpu.memory_space<vmem>>, vector<8x32xf32>
    tpu.vector_store %arg8[%76, %c0_48], %75 {strides = array<i32>} : memref<64x32xf32, #tpu.memory_space<vmem>>, vector<8x32xf32>,
    %c7_i32 = arith.constant 7 : i32
    %c8_i32_49 = arith.constant 8 : i32
    %78 = arith.muli %c7_i32, %c8_i32_49 : i32
    %79 = tpu.assume_multiple %78, 8 : i32
    %80 = arith.index_cast %79 : i32 to index
    %c0_50 = arith.constant 0 : index
    %81 = vector.load %arg7[%80, %c0_50] : memref<64x32xf32, #tpu.memory_space<vmem>>, vector<8x32xf32>
    %c0_51 = arith.constant 0 : index
    %c0_52 = arith.constant 0 : index
    %82 = vector.load %arg3[%c0_51, %c0_52] : memref<32x32xf32, #tpu.memory_space<vmem>>, vector<32x32xf32>
    %cst_53 = arith.constant dense<0.000000e+00> : vector<8x32xf32>
    %83 = tpu.matmul %75, %82, %cst_53 {dimension_numbers = #tpu.dot_dimension_numbers<[1], [0], [0], [1], [0, 0, 1, 1], [], []>} : vector<8x32xf32>, vector<32x32xf32>, vector<8x32xf32> -> vector<8x32xf32>
    %84 = arith.addf %81, %83 : vector<8x32xf32>
    %85 = math.tanh %84 : vector<8x32xf32>
    %86 = arith.index_cast %79 : i32 to index
    %c0_54 = arith.constant 0 : index
    %87 = vector.load %arg8[%86, %c0_54] : memref<64x32xf32, #tpu.memory_space<vmem>>, vector<8x32xf32>
    tpu.vector_store %arg8[%86, %c0_54], %85 {strides = array<i32>} : memref<64x32xf32, #tpu.memory_space<vmem>>, vector<8x32xf32>,
    %c8_i32_55 = arith.constant 8 : i32
    %c0_56 = arith.constant 0 : index
    %c0_57 = arith.constant 0 : index
    %88 = vector.load %arg8[%c0_56, %c0_57] : memref<64x32xf32, #tpu.memory_space<vmem>>, vector<64x32xf32>
    %c0_58 = arith.constant 0 : index
    %c0_59 = arith.constant 0 : index
    %89 = vector.load %arg4[%c0_58, %c0_59] : memref<32x4xf32, #tpu.memory_space<vmem>>, vector<32x4xf32>
    %cst_60 = arith.constant dense<0.000000e+00> : vector<64x4xf32>
    %90 = tpu.matmul %88, %89, %cst_60 {dimension_numbers = #tpu.dot_dimension_numbers<[1], [0], [0], [1], [0, 0, 1, 1], [], []>} : vector<64x32xf32>, vector<32x4xf32>, vector<64x4xf32> -> vector<64x4xf32>
    %c0_61 = arith.constant 0 : index
    %c0_62 = arith.constant 0 : index
    %91 = vector.load %arg5[%c0_61, %c0_62] : memref<1x4xf32, #tpu.memory_space<vmem>>, vector<1x4xf32>
    %92 = vector.broadcast %91 : vector<1x4xf32> to vector<64x4xf32>
    %93 = arith.addf %90, %92 : vector<64x4xf32>
    %c0_63 = arith.constant 0 : index
    %c0_64 = arith.constant 0 : index
    %94 = vector.load %arg6[%c0_63, %c0_64] : memref<64x4xf32, #tpu.memory_space<vmem>>, vector<64x4xf32>
    tpu.vector_store %arg6[%c0_63, %c0_64], %93 {strides = array<i32>} : memref<64x4xf32, #tpu.memory_space<vmem>>, vector<64x4xf32>,
    return
  }
}

</mosaic_0001>

<llo_original>
// kernel: df_model_forward.1
$region0: #{df_model_forward.1}
  #allocation0 [shape = 'u32[]', space=smem, size = 0x4, offset = 0x4, fixed_abs, tag = 'smem constant byte address 0x4 - core index']
  #allocation1 [shape = 'u32[144,128]{1,0:T(1,128)}', space=vmem, size = 0x12000, scoped, tag = 'internal scratch']
  #allocation2 [shape = 'f32[64,32]{1,0:T(8,128)}', space=vmem, size = 0x8000, scoped, tag = 'scratch operand']
  #allocation3 [shape = 'f32[64,32]{1,0:T(8,128)}', space=vmem, size = 0x8000, scoped, tag = 'scratch operand']
  %s0 = inlined_call_operand.vmem [shape: f32[64,4], index: 0, kind: input, shape index: {}]
  %s1 = inlined_call_operand.vmem [shape: f32[4,32], index: 1, kind: input, shape index: {}]
  %s2 = inlined_call_operand.vmem [shape: f32[1,32], index: 2, kind: input, shape index: {}]
  %s3 = inlined_call_operand.vmem [shape: f32[32,32], index: 3, kind: input, shape index: {}]
  %s4 = inlined_call_operand.vmem [shape: f32[32,4], index: 4, kind: input, shape index: {}]
  %s5 = inlined_call_operand.vmem [shape: f32[1,4], index: 5, kind: input, shape index: {}]
  %s6 = inlined_call_operand.vmem [shape: f32[64,4], index: 6, kind: output, shape index: {}]
  %s7 = sld [smem:[#allocation0]]
  $region34: #{df_model_forward.1} parent=0
    _
  %s9 = ssub.s32 1, %s7
  %s10 = scalar_select 0, %s9, %s7
  // Predicated region
  $region2: #{df_model_forward.1} parent=0 // pred_check
    _
  $region3: #{df_model_forward.1} parent=0 // pred_check_branch
    %12 = sbr.rel (0) target = $region5
  $region4: #{df_model_forward.1} parent=0 // pred_region
    _
  $region5: #{df_model_forward.1} parent=0 // pred_fallthru
    _
  // Predicated region
  $region6: #{df_model_forward.1} parent=0 // pred_check
    _
  $region7: #{df_model_forward.1} parent=0 // pred_check_branch
    %14 = sbr.rel (0) target = $region9
  $region8: #{df_model_forward.1} parent=0 // pred_region
    _
  $region9: #{df_model_forward.1} parent=0 // pred_fallthru
    _
  // Predicated region
  $region10: #{df_model_forward.1} parent=0 // pred_check
    _
  $region11: #{df_model_forward.1} parent=0 // pred_check_branch
    %16 = sbr.rel (0) target = $region13
  $region12: #{df_model_forward.1} parent=0 // pred_region
    _
  $region13: #{df_model_forward.1} parent=0 // pred_fallthru
    _
  // Predicated region
  $region14: #{df_model_forward.1} parent=0 // pred_check
    _
  $region15: #{df_model_forward.1} parent=0 // pred_check_branch
    %18 = sbr.rel (0) target = $region17
  $region16: #{df_model_forward.1} parent=0 // pred_region
    _
  $region17: #{df_model_forward.1} parent=0 // pred_fallthru
    _
  // Predicated region
  $region18: #{df_model_forward.1} parent=0 // pred_check
    _
  $region19: #{df_model_forward.1} parent=0 // pred_check_branch
    %20 = sbr.rel (0) target = $region21
  $region20: #{df_model_forward.1} parent=0 // pred_region
    _
  $region21: #{df_model_forward.1} parent=0 // pred_fallthru
    _
  // Predicated region
  $region22: #{df_model_forward.1} parent=0 // pred_check
    _
  $region23: #{df_model_forward.1} parent=0 // pred_check_branch
    %22 = sbr.rel (0) target = $region25
  $region24: #{df_model_forward.1} parent=0 // pred_region
    _
  $region25: #{df_model_forward.1} parent=0 // pred_fallthru
    _
  %v23 = vld [vmem:[%s0] sm:$0xff]
  %v24 = vld [vmem:[%s0 + $0x8] sm:$0xff]
  %v25 = vld [vmem:[%s0 + $0x10] sm:$0xff]
  %v26 = vld [vmem:[%s0 + $0x18] sm:$0xff]
  %v27 = vld [vmem:[%s0 + $0x20] sm:$0xff]
  %v28 = vld [vmem:[%s0 + $0x28] sm:$0xff]
  %v29 = vld [vmem:[%s0 + $0x30] sm:$0xff]
  %v30 = vld [vmem:[%s0 + $0x38] sm:$0xff]
  %v31 = vld [vmem:[%s1] sm:$0xf]
  %v32 = vld [vmem:[%s2] sm:$0x1]
  %v34 = vlaneseq
  %v35 = vshrl.u32 %v34, 7
  %v36 = vsub.s32 0, %v35
  %v37 = vrot.slane %v32, %v36
  %vm39 = vcmask 31744
  %v41 = vsel %vm39, %v23, 0
  %v44 = vsel %vm39, %v24, 0
  %v47 = vsel %vm39, %v25, 0
  %v50 = vsel %vm39, %v26, 0
  %v53 = vsel %vm39, %v27, 0
  %v56 = vsel %vm39, %v28, 0
  %v59 = vsel %vm39, %v29, 0
  %v62 = vsel %vm39, %v30, 0
  %vm64 = vcmask 1043456
  %v66 = vsel %vm64, %v31, 0
  %68 = vmatprep.subr.mxu0 0.0
  %69 = vmatpush1.msra.mxu0 0.0
  %70 = vmatprep.subr.mxu0 0.0
  %71 = vmatpush1.msra.mxu0 0.0
  %72 = vmatprep.subr.mxu0 0.0
  %73 = vmatpush1.msra.mxu0 0.0
  %74 = vmatprep.subr.mxu0 0.0
  %75 = vmatpush1.msra.mxu0 0.0
  %76 = vmatprep.subr.mxu0 0.0
  %77 = vmatpush1.msra.mxu0 0.0
  %78 = vmatprep.subr.mxu0 0.0
  %79 = vmatpush1.msra.mxu0 0.0
  %80 = vmatprep.subr.mxu0 0.0
  %81 = vmatpush1.msra.mxu0 0.0
  %82 = vmatprep.subr.mxu0 0.0
  %83 = vmatpush1.msra.mxu0 0.0
  %84 = vmatprep.subr.mxu0 0.0
  %85 = vmatpush1.msra.mxu0 0.0
  %86 = vmatprep.subr.mxu0 0.0
  %87 = vmatpush1.msra.mxu0 0.0
  %88 = vmatprep.subr.mxu0 0.0
  %89 = vmatpush1.msra.mxu0 0.0
  %90 = vmatprep.subr.mxu0 0.0
  %91 = vmatpush1.msra.mxu0 0.0
  %92 = vmatprep.subr.mxu0 0.0
  %93 = vmatpush1.msra.mxu0 0.0
  %94 = vmatprep.subr.mxu0 0.0
  %95 = vmatpush1.msra.mxu0 0.0
  %96 = vmatprep.subr.mxu0 0.0
  %97 = vmatpush1.msra.mxu0 0.0
  %98 = vmatprep.subr.mxu0 0.0
  %99 = vmatpush1.msra.mxu0 %v66
  %100 = vmatprep.subr.mxu0 0.0
  %101 = vmatpush2.msra.mxu0 0.0
  %102 = vmatprep.subr.mxu0 0.0
  %103 = vmatpush2.msra.mxu0 0.0
  %104 = vmatprep.subr.mxu0 0.0
  %105 = vmatpush2.msra.mxu0 0.0
  %106 = vmatprep.subr.mxu0 0.0
  %107 = vmatpush2.msra.mxu0 0.0
  %108 = vmatprep.subr.mxu0 0.0
  %109 = vmatpush2.msra.mxu0 0.0
  %110 = vmatprep.subr.mxu0 0.0
  %111 = vmatpush2.msra.mxu0 0.0
  %112 = vmatprep.subr.mxu0 0.0
  %113 = vmatpush2.msra.mxu0 0.0
  %114 = vmatprep.subr.mxu0 0.0
  %115 = vmatpush2.msra.mxu0 0.0
  %116 = vmatprep.subr.mxu0 0.0
  %117 = vmatpush2.msra.mxu0 0.0
  %118 = vmatprep.subr.mxu0 0.0
  %119 = vmatpush2.msra.mxu0 0.0
  %120 = vmatprep.subr.mxu0 0.0
  %121 = vmatpush2.msra.mxu0 0.0
  %122 = vmatprep.subr.mxu0 0.0
  %123 = vmatpush2.msra.mxu0 0.0
  %124 = vmatprep.subr.mxu0 0.0
  %125 = vmatpush2.msra.mxu0 0.0
  %126 = vmatprep.subr.mxu0 0.0
  %127 = vmatpush2.msra.mxu0 0.0
  %128 = vmatprep.subr.mxu0 0.0
  %129 = vmatpush2.msra.mxu0 0.0
  %130 = vmatprep.subr.mxu0 0.0
  %131 = vmatpush2.msra.mxu0 0.0
  %132 = vmatprep.mubr.f32.mxu0 0.0
  %133 = vmatmul.mubr.f32.gmra.mxu0 %v41
  %v134 = vpop.f32.mrf.mxu0
  %v135 = vadd.f32 %v37, %v134
  %v136 = vpop.f32.mrf.mxu0
  %137 = vmatprep.mubr.f32.mxu0 0.0
  %138 = vmatmul.mubr.f32.gmra.mxu0 %v44
  %v139 = vpop.f32.mrf.mxu0
  %v140 = vadd.f32 %v37, %v139
  %v141 = vpop.f32.mrf.mxu0
  %142 = vmatprep.mubr.f32.mxu0 0.0
  %143 = vmatmul.mubr.f32.gmra.mxu0 %v47
  %v144 = vpop.f32.mrf.mxu0
  %v145 = vadd.f32 %v37, %v144
  %v146 = vpop.f32.mrf.mxu0
  %147 = vmatprep.mubr.f32.mxu0 0.0
  %148 = vmatmul.mubr.f32.gmra.mxu0 %v50
  %v149 = vpop.f32.mrf.mxu0
  %v150 = vadd.f32 %v37, %v149
  %v151 = vpop.f32.mrf.mxu0
  %152 = vmatprep.mubr.f32.mxu0 0.0
  %153 = vmatmul.mubr.f32.gmra.mxu0 %v53
  %v154 = vpop.f32.mrf.mxu0
  %v155 = vadd.f32 %v37, %v154
  %v156 = vpop.f32.mrf.mxu0
  %157 = vmatprep.mubr.f32.mxu0 0.0
  %158 = vmatmul.mubr.f32.gmra.mxu0 %v56
  %v159 = vpop.f32.mrf.mxu0
  %v160 = vadd.f32 %v37, %v159
  %v161 = vpop.f32.mrf.mxu0
  %162 = vmatprep.mubr.f32.mxu0 0.0
  %163 = vmatmul.mubr.f32.gmra.mxu0 %v59
  %v164 = vpop.f32.mrf.mxu0
  %v165 = vadd.f32 %v37, %v164
  %v166 = vpop.f32.mrf.mxu0
  %167 = vmatprep.mubr.f32.mxu0 0.0
  %168 = vmatmul.mubr.f32.gmra.mxu0 %v62
  %v169 = vpop.f32.mrf.mxu0
  %v170 = vadd.f32 %v37, %v169
  %v171 = vpop.f32.mrf.mxu0
  %172 = vdwg.mxu0
  %vm173 = vcmask 261120
  %174 = vst.msk [vmem:[#allocation2] sm:$0xff] %vm173, %v135
  %175 = vst.msk [vmem:[#allocation2 + $0x8] sm:$0xff] %vm173, %v140
  %176 = vst.msk [vmem:[#allocation2 + $0x10] sm:$0xff] %vm173, %v145
  %177 = vst.msk [vmem:[#allocation2 + $0x18] sm:$0xff] %vm173, %v150
  %178 = vst.msk [vmem:[#allocation2 + $0x20] sm:$0xff] %vm173, %v155
  %179 = vst.msk [vmem:[#allocation2 + $0x28] sm:$0xff] %vm173, %v160
  %180 = vst.msk [vmem:[#allocation2 + $0x30] sm:$0xff] %vm173, %v165
  %181 = vst.msk [vmem:[#allocation2 + $0x38] sm:$0xff] %vm173, %v170
  %v182 = vld [vmem:[#allocation2] sm:$0xff]
  %v183 = vld [vmem:[%s3] sm:$0xff]
  %v184 = vld [vmem:[%s3 + $0x8] sm:$0xff]
  %v185 = vld [vmem:[%s3 + $0x10] sm:$0xff]
  %v186 = vld [vmem:[%s3 + $0x18] sm:$0xff]
  %v188 = vsel %vm173, 0.0, 0
  %190 = vmatprep.subr.mxu0 0.0
  %191 = vmatpush1.msra.mxu0 0.0
  %192 = vmatprep.subr.mxu0 0.0
  %193 = vmatpush1.msra.mxu0 0.0
  %194 = vmatprep.subr.mxu0 0.0
  %195 = vmatpush1.msra.mxu0 0.0
  %196 = vmatprep.subr.mxu0 0.0
  %197 = vmatpush1.msra.mxu0 0.0
  %198 = vmatprep.subr.mxu0 0.0
  %199 = vmatpush1.msra.mxu0 0.0
  %200 = vmatprep.subr.mxu0 0.0
  %201 = vmatpush1.msra.mxu0 0.0
  %202 = vmatprep.subr.mxu0 0.0
  %203 = vmatpush1.msra.mxu0 0.0
  %204 = vmatprep.subr.mxu0 0.0
  %205 = vmatpush1.msra.mxu0 0.0
  %206 = vmatprep.subr.mxu0 0.0
  %207 = vmatpush1.msra.mxu0 0.0
  %208 = vmatprep.subr.mxu0 0.0
  %209 = vmatpush1.msra.mxu0 0.0
  %210 = vmatprep.subr.mxu0 0.0
  %211 = vmatpush1.msra.mxu0 0.0
  %212 = vmatprep.subr.mxu0 0.0
  %213 = vmatpush1.msra.mxu0 0.0
  %214 = vmatprep.subr.mxu0 0.0
  %215 = vmatpush1.msra.mxu0 %v186
  %216 = vmatprep.subr.mxu0 0.0
  %217 = vmatpush1.msra.mxu0 %v185
  %218 = vmatprep.subr.mxu0 0.0
  %219 = vmatpush1.msra.mxu0 %v184
  %220 = vmatprep.subr.mxu0 0.0
  %221 = vmatpush1.msra.mxu0 %v183
  %222 = vmatprep.subr.mxu0 0.0
  %223 = vmatpush2.msra.mxu0 0.0
  %224 = vmatprep.subr.mxu0 0.0
  %225 = vmatpush2.msra.mxu0 0.0
  %226 = vmatprep.subr.mxu0 0.0
  %227 = vmatpush2.msra.mxu0 0.0
  %228 = vmatprep.subr.mxu0 0.0
  %229 = vmatpush2.msra.mxu0 0.0
  %230 = vmatprep.subr.mxu0 0.0
  %231 = vmatpush2.msra.mxu0 0.0
  %232 = vmatprep.subr.mxu0 0.0
  %233 = vmatpush2.msra.mxu0 0.0
  %234 = vmatprep.subr.mxu0 0.0
  %235 = vmatpush2.msra.mxu0 0.0
  %236 = vmatprep.subr.mxu0 0.0
  %237 = vmatpush2.msra.mxu0 0.0
  %238 = vmatprep.subr.mxu0 0.0
  %239 = vmatpush2.msra.mxu0 0.0
  %240 = vmatprep.subr.mxu0 0.0
  %241 = vmatpush2.msra.mxu0 0.0
  %242 = vmatprep.subr.mxu0 0.0
  %243 = vmatpush2.msra.mxu0 0.0
  %244 = vmatprep.subr.mxu0 0.0
  %245 = vmatpush2.msra.mxu0 0.0
  %246 = vmatprep.subr.mxu0 0.0
  %247 = vmatpush2.msra.mxu0 0.0
  %248 = vmatprep.subr.mxu0 0.0
  %249 = vmatpush2.msra.mxu0 0.0
  %250 = vmatprep.subr.mxu0 0.0
  %251 = vmatpush2.msra.mxu0 0.0
  %252 = vmatprep.subr.mxu0 0.0
  %253 = vmatpush2.msra.mxu0 0.0
  %254 = vmatprep.mubr.f32.mxu0 0.0
  %255 = vmatmul.mubr.f32.gmra.mxu0 %v188
  %v256 = vpop.f32.mrf.mxu0
  %v257 = vadd.f32 0.0, %v256
  %v258 = vpop.f32.mrf.mxu0
  %259 = vdwg.mxu0
  %v260 = vadd.f32 %v182, %v257
  %v261 = vtanh.pop %v260
  %262 = vst.msk [vmem:[#allocation3] sm:$0xff] %vm173, %v261
  %s263 = scalar_lea.vmem [#allocation2], 8
  %v264 = vld [vmem:[%s263] sm:$0xff]
  %v265 = vld [vmem:[%s3] sm:$0xff]
  %v266 = vld [vmem:[%s3 + $0x8] sm:$0xff]
  %v267 = vld [vmem:[%s3 + $0x10] sm:$0xff]
  %v268 = vld [vmem:[%s3 + $0x18] sm:$0xff]
  %v270 = vsel %vm173, %v261, 0
  %272 = vmatprep.subr.mxu0 0.0
  %273 = vmatpush1.msra.mxu0 0.0
  %274 = vmatprep.subr.mxu0 0.0
  %275 = vmatpush1.msra.mxu0 0.0
  %276 = vmatprep.subr.mxu0 0.0
  %277 = vmatpush1.msra.mxu0 0.0
  %278 = vmatprep.subr.mxu0 0.0
  %279 = vmatpush1.msra.mxu0 0.0
  %280 = vmatprep.subr.mxu0 0.0
  %281 = vmatpush1.msra.mxu0 0.0
  %282 = vmatprep.subr.mxu0 0.0
  %283 = vmatpush1.msra.mxu0 0.0
  %284 = vmatprep.subr.mxu0 0.0
  %285 = vmatpush1.msra.mxu0 0.0
  %286 = vmatprep.subr.mxu0 0.0
  %287 = vmatpush1.msra.mxu0 0.0
  %288 = vmatprep.subr.mxu0 0.0
  %289 = vmatpush1.msra.mxu0 0.0
  %290 = vmatprep.subr.mxu0 0.0
  %291 = vmatpush1.msra.mxu0 0.0
  %292 = vmatprep.subr.mxu0 0.0
  %293 = vmatpush1.msra.mxu0 0.0
  %294 = vmatprep.subr.mxu0 0.0
  %295 = vmatpush1.msra.mxu0 0.0
  %296 = vmatprep.subr.mxu0 0.0
  %297 = vmatpush1.msra.mxu0 %v268
  %298 = vmatprep.subr.mxu0 0.0
  %299 = vmatpush1.msra.mxu0 %v267
  %300 = vmatprep.subr.mxu0 0.0
  %301 = vmatpush1.msra.mxu0 %v266
  %302 = vmatprep.subr.mxu0 0.0
  %303 = vmatpush1.msra.mxu0 %v265
  %304 = vmatprep.subr.mxu0 0.0
  %305 = vmatpush2.msra.mxu0 0.0
  %306 = vmatprep.subr.mxu0 0.0
  %307 = vmatpush2.msra.mxu0 0.0
  %308 = vmatprep.subr.mxu0 0.0
  %309 = vmatpush2.msra.mxu0 0.0
  %310 = vmatprep.subr.mxu0 0.0
  %311 = vmatpush2.msra.mxu0 0.0
  %312 = vmatprep.subr.mxu0 0.0
  %313 = vmatpush2.msra.mxu0 0.0
  %314 = vmatprep.subr.mxu0 0.0
  %315 = vmatpush2.msra.mxu0 0.0
  %316 = vmatprep.subr.mxu0 0.0
  %317 = vmatpush2.msra.mxu0 0.0
  %318 = vmatprep.subr.mxu0 0.0
  %319 = vmatpush2.msra.mxu0 0.0
  %320 = vmatprep.subr.mxu0 0.0
  %321 = vmatpush2.msra.mxu0 0.0
  %322 = vmatprep.subr.mxu0 0.0
  %323 = vmatpush2.msra.mxu0 0.0
  %324 = vmatprep.subr.mxu0 0.0
  %325 = vmatpush2.msra.mxu0 0.0
  %326 = vmatprep.subr.mxu0 0.0
  %327 = vmatpush2.msra.mxu0 0.0
  %328 = vmatprep.subr.mxu0 0.0
  %329 = vmatpush2.msra.mxu0 0.0
  %330 = vmatprep.subr.mxu0 0.0
  %331 = vmatpush2.msra.mxu0 0.0
  %332 = vmatprep.subr.mxu0 0.0
  %333 = vmatpush2.msra.mxu0 0.0
  %334 = vmatprep.subr.mxu0 0.0
  %335 = vmatpush2.msra.mxu0 0.0
  %336 = vmatprep.mubr.f32.mxu0 0.0
  %337 = vmatmul.mubr.f32.gmra.mxu0 %v270
  %v338 = vpop.f32.mrf.mxu0
  %v339 = vadd.f32 0.0, %v338
  %v340 = vpop.f32.mrf.mxu0
  %341 = vdwg.mxu0
  %v342 = vadd.f32 %v264, %v339
  %v343 = vtanh.pop %v342
  %s344 = scalar_lea.vmem [#allocation3], 8
  %345 = vst.msk [vmem:[%s344] sm:$0xff] %vm173, %v343
  %s346 = scalar_lea.vmem [#allocation2], 16
  %v347 = vld [vmem:[%s346] sm:$0xff]
  %v348 = vld [vmem:[%s3] sm:$0xff]
  %v349 = vld [vmem:[%s3 + $0x8] sm:$0xff]
  %v350 = vld [vmem:[%s3 + $0x10] sm:$0xff]
  %v351 = vld [vmem:[%s3 + $0x18] sm:$0xff]
  %v353 = vsel %vm173, %v343, 0
  %355 = vmatprep.subr.mxu0 0.0
  %356 = vmatpush1.msra.mxu0 0.0
  %357 = vmatprep.subr.mxu0 0.0
  %358 = vmatpush1.msra.mxu0 0.0
  %359 = vmatprep.subr.mxu0 0.0
  %360 = vmatpush1.msra.mxu0 0.0
  %361 = vmatprep.subr.mxu0 0.0
  %362 = vmatpush1.msra.mxu0 0.0
  %363 = vmatprep.subr.mxu0 0.0
  %364 = vmatpush1.msra.mxu0 0.0
  %365 = vmatprep.subr.mxu0 0.0
  %366 = vmatpush1.msra.mxu0 0.0
  %367 = vmatprep.subr.mxu0 0.0
  %368 = vmatpush1.msra.mxu0 0.0
  %369 = vmatprep.subr.mxu0 0.0
  %370 = vmatpush1.msra.mxu0 0.0
  %371 = vmatprep.subr.mxu0 0.0
  %372 = vmatpush1.msra.mxu0 0.0
  %373 = vmatprep.subr.mxu0 0.0
  %374 = vmatpush1.msra.mxu0 0.0
  %375 = vmatprep.subr.mxu0 0.0
  %376 = vmatpush1.msra.mxu0 0.0
  %377 = vmatprep.subr.mxu0 0.0
  %378 = vmatpush1.msra.mxu0 0.0
  %379 = vmatprep.subr.mxu0 0.0
  %380 = vmatpush1.msra.mxu0 %v351
  %381 = vmatprep.subr.mxu0 0.0
  %382 = vmatpush1.msra.mxu0 %v350
  %383 = vmatprep.subr.mxu0 0.0
  %384 = vmatpush1.msra.mxu0 %v349
  %385 = vmatprep.subr.mxu0 0.0
  %386 = vmatpush1.msra.mxu0 %v348
  %387 = vmatprep.subr.mxu0 0.0
  %388 = vmatpush2.msra.mxu0 0.0
  %389 = vmatprep.subr.mxu0 0.0
  %390 = vmatpush2.msra.mxu0 0.0
  %391 = vmatprep.subr.mxu0 0.0
  %392 = vmatpush2.msra.mxu0 0.0
  %393 = vmatprep.subr.mxu0 0.0
  %394 = vmatpush2.msra.mxu0 0.0
  %395 = vmatprep.subr.mxu0 0.0
  %396 = vmatpush2.msra.mxu0 0.0
  %397 = vmatprep.subr.mxu0 0.0
  %398 = vmatpush2.msra.mxu0 0.0
  %399 = vmatprep.subr.mxu0 0.0
  %400 = vmatpush2.msra.mxu0 0.0
  %401 = vmatprep.subr.mxu0 0.0
  %402 = vmatpush2.msra.mxu0 0.0
  %403 = vmatprep.subr.mxu0 0.0
  %404 = vmatpush2.msra.mxu0 0.0
  %405 = vmatprep.subr.mxu0 0.0
  %406 = vmatpush2.msra.mxu0 0.0
  %407 = vmatprep.subr.mxu0 0.0
  %408 = vmatpush2.msra.mxu0 0.0
  %409 = vmatprep.subr.mxu0 0.0
  %410 = vmatpush2.msra.mxu0 0.0
  %411 = vmatprep.subr.mxu0 0.0
  %412 = vmatpush2.msra.mxu0 0.0
  %413 = vmatprep.subr.mxu0 0.0
  %414 = vmatpush2.msra.mxu0 0.0
  %415 = vmatprep.subr.mxu0 0.0
  %416 = vmatpush2.msra.mxu0 0.0
  %417 = vmatprep.subr.mxu0 0.0
  %418 = vmatpush2.msra.mxu0 0.0
  %419 = vmatprep.mubr.f32.mxu0 0.0
  %420 = vmatmul.mubr.f32.gmra.mxu0 %v353
  %v421 = vpop.f32.mrf.mxu0
  %v422 = vadd.f32 0.0, %v421
  %v423 = vpop.f32.mrf.mxu0
  %424 = vdwg.mxu0
  %v425 = vadd.f32 %v347, %v422
  %v426 = vtanh.pop %v425
  %s427 = scalar_lea.vmem [#allocation3], 16
  %428 = vst.msk [vmem:[%s427] sm:$0xff] %vm173, %v426
  %s429 = scalar_lea.vmem [#allocation2], 24
  %v430 = vld [vmem:[%s429] sm:$0xff]
  %v431 = vld [vmem:[%s3] sm:$0xff]
  %v432 = vld [vmem:[%s3 + $0x8] sm:$0xff]
  %v433 = vld [vmem:[%s3 + $0x10] sm:$0xff]
  %v434 = vld [vmem:[%s3 + $0x18] sm:$0xff]
  %v436 = vsel %vm173, %v426, 0
  %438 = vmatprep.subr.mxu0 0.0
  %439 = vmatpush1.msra.mxu0 0.0
  %440 = vmatprep.subr.mxu0 0.0
  %441 = vmatpush1.msra.mxu0 0.0
  %442 = vmatprep.subr.mxu0 0.0
  %443 = vmatpush1.msra.mxu0 0.0
  %444 = vmatprep.subr.mxu0 0.0
  %445 = vmatpush1.msra.mxu0 0.0
  %446 = vmatprep.subr.mxu0 0.0
  %447 = vmatpush1.msra.mxu0 0.0
  %448 = vmatprep.subr.mxu0 0.0
  %449 = vmatpush1.msra.mxu0 0.0
  %450 = vmatprep.subr.mxu0 0.0
  %451 = vmatpush1.msra.mxu0 0.0
  %452 = vmatprep.subr.mxu0 0.0
  %453 = vmatpush1.msra.mxu0 0.0
  %454 = vmatprep.subr.mxu0 0.0
  %455 = vmatpush1.msra.mxu0 0.0
  %456 = vmatprep.subr.mxu0 0.0
  %457 = vmatpush1.msra.mxu0 0.0
  %458 = vmatprep.subr.mxu0 0.0
  %459 = vmatpush1.msra.mxu0 0.0
  %460 = vmatprep.subr.mxu0 0.0
  %461 = vmatpush1.msra.mxu0 0.0
  %462 = vmatprep.subr.mxu0 0.0
  %463 = vmatpush1.msra.mxu0 %v434
  %464 = vmatprep.subr.mxu0 0.0
  %465 = vmatpush1.msra.mxu0 %v433
  %466 = vmatprep.subr.mxu0 0.0
  %467 = vmatpush1.msra.mxu0 %v432
  %468 = vmatprep.subr.mxu0 0.0
  %469 = vmatpush1.msra.mxu0 %v431
  %470 = vmatprep.subr.mxu0 0.0
  %471 = vmatpush2.msra.mxu0 0.0
  %472 = vmatprep.subr.mxu0 0.0
  %473 = vmatpush2.msra.mxu0 0.0
  %474 = vmatprep.subr.mxu0 0.0
  %475 = vmatpush2.msra.mxu0 0.0
  %476 = vmatprep.subr.mxu0 0.0
  %477 = vmatpush2.msra.mxu0 0.0
  %478 = vmatprep.subr.mxu0 0.0
  %479 = vmatpush2.msra.mxu0 0.0
  %480 = vmatprep.subr.mxu0 0.0
  %481 = vmatpush2.msra.mxu0 0.0
  %482 = vmatprep.subr.mxu0 0.0
  %483 = vmatpush2.msra.mxu0 0.0
  %484 = vmatprep.subr.mxu0 0.0
  %485 = vmatpush2.msra.mxu0 0.0
  %486 = vmatprep.subr.mxu0 0.0
  %487 = vmatpush2.msra.mxu0 0.0
  %488 = vmatprep.subr.mxu0 0.0
  %489 = vmatpush2.msra.mxu0 0.0
  %490 = vmatprep.subr.mxu0 0.0
  %491 = vmatpush2.msra.mxu0 0.0
  %492 = vmatprep.subr.mxu0 0.0
  %493 = vmatpush2.msra.mxu0 0.0
  %494 = vmatprep.subr.mxu0 0.0
  %495 = vmatpush2.msra.mxu0 0.0
  %496 = vmatprep.subr.mxu0 0.0
  %497 = vmatpush2.msra.mxu0 0.0
  %498 = vmatprep.subr.mxu0 0.0
  %499 = vmatpush2.msra.mxu0 0.0
  %500 = vmatprep.subr.mxu0 0.0
  %501 = vmatpush2.msra.mxu0 0.0
  %502 = vmatprep.mubr.f32.mxu0 0.0
  %503 = vmatmul.mubr.f32.gmra.mxu0 %v436
  %v504 = vpop.f32.mrf.mxu0
  %v505 = vadd.f32 0.0, %v504
  %v506 = vpop.f32.mrf.mxu0
  %507 = vdwg.mxu0
  %v508 = vadd.f32 %v430, %v505
  %v509 = vtanh.pop %v508
  %s510 = scalar_lea.vmem [#allocation3], 24
  %511 = vst.msk [vmem:[%s510] sm:$0xff] %vm173, %v509
  %s512 = scalar_lea.vmem [#allocation2], 32
  %v513 = vld [vmem:[%s512] sm:$0xff]
  %v514 = vld [vmem:[%s3] sm:$0xff]
  %v515 = vld [vmem:[%s3 + $0x8] sm:$0xff]
  %v516 = vld [vmem:[%s3 + $0x10] sm:$0xff]
  %v517 = vld [vmem:[%s3 + $0x18] sm:$0xff]
  %v519 = vsel %vm173, %v509, 0
  %521 = vmatprep.subr.mxu0 0.0
  %522 = vmatpush1.msra.mxu0 0.0
  %523 = vmatprep.subr.mxu0 0.0
  %524 = vmatpush1.msra.mxu0 0.0
  %525 = vmatprep.subr.mxu0 0.0
  %526 = vmatpush1.msra.mxu0 0.0
  %527 = vmatprep.subr.mxu0 0.0
  %528 = vmatpush1.msra.mxu0 0.0
  %529 = vmatprep.subr.mxu0 0.0
  %530 = vmatpush1.msra.mxu0 0.0
  %531 = vmatprep.subr.mxu0 0.0
  %532 = vmatpush1.msra.mxu0 0.0
  %533 = vmatprep.subr.mxu0 0.0
  %534 = vmatpush1.msra.mxu0 0.0
  %535 = vmatprep.subr.mxu0 0.0
  %536 = vmatpush1.msra.mxu0 0.0
  %537 = vmatprep.subr.mxu0 0.0
  %538 = vmatpush1.msra.mxu0 0.0
  %539 = vmatprep.subr.mxu0 0.0
  %540 = vmatpush1.msra.mxu0 0.0
  %541 = vmatprep.subr.mxu0 0.0
  %542 = vmatpush1.msra.mxu0 0.0
  %543 = vmatprep.subr.mxu0 0.0
  %544 = vmatpush1.msra.mxu0 0.0
  %545 = vmatprep.subr.mxu0 0.0
  %546 = vmatpush1.msra.mxu0 %v517
  %547 = vmatprep.subr.mxu0 0.0
  %548 = vmatpush1.msra.mxu0 %v516
  %549 = vmatprep.subr.mxu0 0.0
  %550 = vmatpush1.msra.mxu0 %v515
  %551 = vmatprep.subr.mxu0 0.0
  %552 = vmatpush1.msra.mxu0 %v514
  %553 = vmatprep.subr.mxu0 0.0
  %554 = vmatpush2.msra.mxu0 0.0
  %555 = vmatprep.subr.mxu0 0.0
  %556 = vmatpush2.msra.mxu0 0.0
  %557 = vmatprep.subr.mxu0 0.0
  %558 = vmatpush2.msra.mxu0 0.0
  %559 = vmatprep.subr.mxu0 0.0
  %560 = vmatpush2.msra.mxu0 0.0
  %561 = vmatprep.subr.mxu0 0.0
  %562 = vmatpush2.msra.mxu0 0.0
  %563 = vmatprep.subr.mxu0 0.0
  %564 = vmatpush2.msra.mxu0 0.0
  %565 = vmatprep.subr.mxu0 0.0
  %566 = vmatpush2.msra.mxu0 0.0
  %567 = vmatprep.subr.mxu0 0.0
  %568 = vmatpush2.msra.mxu0 0.0
  %569 = vmatprep.subr.mxu0 0.0
  %570 = vmatpush2.msra.mxu0 0.0
  %571 = vmatprep.subr.mxu0 0.0
  %572 = vmatpush2.msra.mxu0 0.0
  %573 = vmatprep.subr.mxu0 0.0
  %574 = vmatpush2.msra.mxu0 0.0
  %575 = vmatprep.subr.mxu0 0.0
  %576 = vmatpush2.msra.mxu0 0.0
  %577 = vmatprep.subr.mxu0 0.0
  %578 = vmatpush2.msra.mxu0 0.0
  %579 = vmatprep.subr.mxu0 0.0
  %580 = vmatpush2.msra.mxu0 0.0
  %581 = vmatprep.subr.mxu0 0.0
  %582 = vmatpush2.msra.mxu0 0.0
  %583 = vmatprep.subr.mxu0 0.0
  %584 = vmatpush2.msra.mxu0 0.0
  %585 = vmatprep.mubr.f32.mxu0 0.0
  %586 = vmatmul.mubr.f32.gmra.mxu0 %v519
  %v587 = vpop.f32.mrf.mxu0
  %v588 = vadd.f32 0.0, %v587
  %v589 = vpop.f32.mrf.mxu0
  %590 = vdwg.mxu0
  %v591 = vadd.f32 %v513, %v588
  %v592 = vtanh.pop %v591
  %s593 = scalar_lea.vmem [#allocation3], 32
  %594 = vst.msk [vmem:[%s593] sm:$0xff] %vm173, %v592
  %s595 = scalar_lea.vmem [#allocation2], 40
  %v596 = vld [vmem:[%s595] sm:$0xff]
  %v597 = vld [vmem:[%s3] sm:$0xff]
  %v598 = vld [vmem:[%s3 + $0x8] sm:$0xff]
  %v599 = vld [vmem:[%s3 + $0x10] sm:$0xff]
  %v600 = vld [vmem:[%s3 + $0x18] sm:$0xff]
  %v602 = vsel %vm173, %v592, 0
  %604 = vmatprep.subr.mxu0 0.0
  %605 = vmatpush1.msra.mxu0 0.0
  %606 = vmatprep.subr.mxu0 0.0
  %607 = vmatpush1.msra.mxu0 0.0
  %608 = vmatprep.subr.mxu0 0.0
  %609 = vmatpush1.msra.mxu0 0.0
  %610 = vmatprep.subr.mxu0 0.0
  %611 = vmatpush1.msra.mxu0 0.0
  %612 = vmatprep.subr.mxu0 0.0
  %613 = vmatpush1.msra.mxu0 0.0
  %614 = vmatprep.subr.mxu0 0.0
  %615 = vmatpush1.msra.mxu0 0.0
  %616 = vmatprep.subr.mxu0 0.0
  %617 = vmatpush1.msra.mxu0 0.0
  %618 = vmatprep.subr.mxu0 0.0
  %619 = vmatpush1.msra.mxu0 0.0
  %620 = vmatprep.subr.mxu0 0.0
  %621 = vmatpush1.msra.mxu0 0.0
  %622 = vmatprep.subr.mxu0 0.0
  %623 = vmatpush1.msra.mxu0 0.0
  %624 = vmatprep.subr.mxu0 0.0
  %625 = vmatpush1.msra.mxu0 0.0
  %626 = vmatprep.subr.mxu0 0.0
  %627 = vmatpush1.msra.mxu0 0.0
  %628 = vmatprep.subr.mxu0 0.0
  %629 = vmatpush1.msra.mxu0 %v600
  %630 = vmatprep.subr.mxu0 0.0
  %631 = vmatpush1.msra.mxu0 %v599
  %632 = vmatprep.subr.mxu0 0.0
  %633 = vmatpush1.msra.mxu0 %v598
  %634 = vmatprep.subr.mxu0 0.0
  %635 = vmatpush1.msra.mxu0 %v597
  %636 = vmatprep.subr.mxu0 0.0
  %637 = vmatpush2.msra.mxu0 0.0
  %638 = vmatprep.subr.mxu0 0.0
  %639 = vmatpush2.msra.mxu0 0.0
  %640 = vmatprep.subr.mxu0 0.0
  %641 = vmatpush2.msra.mxu0 0.0
  %642 = vmatprep.subr.mxu0 0.0
  %643 = vmatpush2.msra.mxu0 0.0
  %644 = vmatprep.subr.mxu0 0.0
  %645 = vmatpush2.msra.mxu0 0.0
  %646 = vmatprep.subr.mxu0 0.0
  %647 = vmatpush2.msra.mxu0 0.0
  %648 = vmatprep.subr.mxu0 0.0
  %649 = vmatpush2.msra.mxu0 0.0
  %650 = vmatprep.subr.mxu0 0.0
  %651 = vmatpush2.msra.mxu0 0.0
  %652 = vmatprep.subr.mxu0 0.0
  %653 = vmatpush2.msra.mxu0 0.0
  %654 = vmatprep.subr.mxu0 0.0
  %655 = vmatpush2.msra.mxu0 0.0
  %656 = vmatprep.subr.mxu0 0.0
  %657 = vmatpush2.msra.mxu0 0.0
  %658 = vmatprep.subr.mxu0 0.0
  %659 = vmatpush2.msra.mxu0 0.0
  %660 = vmatprep.subr.mxu0 0.0
  %661 = vmatpush2.msra.mxu0 0.0
  %662 = vmatprep.subr.mxu0 0.0
  %663 = vmatpush2.msra.mxu0 0.0
  %664 = vmatprep.subr.mxu0 0.0
  %665 = vmatpush2.msra.mxu0 0.0
  %666 = vmatprep.subr.mxu0 0.0
  %667 = vmatpush2.msra.mxu0 0.0
  %668 = vmatprep.mubr.f32.mxu0 0.0
  %669 = vmatmul.mubr.f32.gmra.mxu0 %v602
  %v670 = vpop.f32.mrf.mxu0
  %v671 = vadd.f32 0.0, %v670
  %v672 = vpop.f32.mrf.mxu0
  %673 = vdwg.mxu0
  %v674 = vadd.f32 %v596, %v671
  %v675 = vtanh.pop %v674
  %s676 = scalar_lea.vmem [#allocation3], 40
  %677 = vst.msk [vmem:[%s676] sm:$0xff] %vm173, %v675
  %s678 = scalar_lea.vmem [#allocation2], 48
  %v679 = vld [vmem:[%s678] sm:$0xff]
  %v680 = vld [vmem:[%s3] sm:$0xff]
  %v681 = vld [vmem:[%s3 + $0x8] sm:$0xff]
  %v682 = vld [vmem:[%s3 + $0x10] sm:$0xff]
  %v683 = vld [vmem:[%s3 + $0x18] sm:$0xff]
  %v685 = vsel %vm173, %v675, 0
  %687 = vmatprep.subr.mxu0 0.0
  %688 = vmatpush1.msra.mxu0 0.0
  %689 = vmatprep.subr.mxu0 0.0
  %690 = vmatpush1.msra.mxu0 0.0
  %691 = vmatprep.subr.mxu0 0.0
  %692 = vmatpush1.msra.mxu0 0.0
  %693 = vmatprep.subr.mxu0 0.0
  %694 = vmatpush1.msra.mxu0 0.0
  %695 = vmatprep.subr.mxu0 0.0
  %696 = vmatpush1.msra.mxu0 0.0
  %697 = vmatprep.subr.mxu0 0.0
  %698 = vmatpush1.msra.mxu0 0.0
  %699 = vmatprep.subr.mxu0 0.0
  %700 = vmatpush1.msra.mxu0 0.0
  %701 = vmatprep.subr.mxu0 0.0
  %702 = vmatpush1.msra.mxu0 0.0
  %703 = vmatprep.subr.mxu0 0.0
  %704 = vmatpush1.msra.mxu0 0.0
  %705 = vmatprep.subr.mxu0 0.0
  %706 = vmatpush1.msra.mxu0 0.0
  %707 = vmatprep.subr.mxu0 0.0
  %708 = vmatpush1.msra.mxu0 0.0
  %709 = vmatprep.subr.mxu0 0.0
  %710 = vmatpush1.msra.mxu0 0.0
  %711 = vmatprep.subr.mxu0 0.0
  %712 = vmatpush1.msra.mxu0 %v683
  %713 = vmatprep.subr.mxu0 0.0
  %714 = vmatpush1.msra.mxu0 %v682
  %715 = vmatprep.subr.mxu0 0.0
  %716 = vmatpush1.msra.mxu0 %v681
  %717 = vmatprep.subr.mxu0 0.0
  %718 = vmatpush1.msra.mxu0 %v680
  %719 = vmatprep.subr.mxu0 0.0
  %720 = vmatpush2.msra.mxu0 0.0
  %721 = vmatprep.subr.mxu0 0.0
  %722 = vmatpush2.msra.mxu0 0.0
  %723 = vmatprep.subr.mxu0 0.0
  %724 = vmatpush2.msra.mxu0 0.0
  %725 = vmatprep.subr.mxu0 0.0
  %726 = vmatpush2.msra.mxu0 0.0
  %727 = vmatprep.subr.mxu0 0.0
  %728 = vmatpush2.msra.mxu0 0.0
  %729 = vmatprep.subr.mxu0 0.0
  %730 = vmatpush2.msra.mxu0 0.0
  %731 = vmatprep.subr.mxu0 0.0
  %732 = vmatpush2.msra.mxu0 0.0
  %733 = vmatprep.subr.mxu0 0.0
  %734 = vmatpush2.msra.mxu0 0.0
  %735 = vmatprep.subr.mxu0 0.0
  %736 = vmatpush2.msra.mxu0 0.0
  %737 = vmatprep.subr.mxu0 0.0
  %738 = vmatpush2.msra.mxu0 0.0
  %739 = vmatprep.subr.mxu0 0.0
  %740 = vmatpush2.msra.mxu0 0.0
  %741 = vmatprep.subr.mxu0 0.0
  %742 = vmatpush2.msra.mxu0 0.0
  %743 = vmatprep.subr.mxu0 0.0
  %744 = vmatpush2.msra.mxu0 0.0
  %745 = vmatprep.subr.mxu0 0.0
  %746 = vmatpush2.msra.mxu0 0.0
  %747 = vmatprep.subr.mxu0 0.0
  %748 = vmatpush2.msra.mxu0 0.0
  %749 = vmatprep.subr.mxu0 0.0
  %750 = vmatpush2.msra.mxu0 0.0
  %751 = vmatprep.mubr.f32.mxu0 0.0
  %752 = vmatmul.mubr.f32.gmra.mxu0 %v685
  %v753 = vpop.f32.mrf.mxu0
  %v754 = vadd.f32 0.0, %v753
  %v755 = vpop.f32.mrf.mxu0
  %756 = vdwg.mxu0
  %v757 = vadd.f32 %v679, %v754
  %v758 = vtanh.pop %v757
  %s759 = scalar_lea.vmem [#allocation3], 48
  %760 = vst.msk [vmem:[%s759] sm:$0xff] %vm173, %v758
  %s761 = scalar_lea.vmem [#allocation2], 56
  %v762 = vld [vmem:[%s761] sm:$0xff]
  %v763 = vld [vmem:[%s3] sm:$0xff]
  %v764 = vld [vmem:[%s3 + $0x8] sm:$0xff]
  %v765 = vld [vmem:[%s3 + $0x10] sm:$0xff]
  %v766 = vld [vmem:[%s3 + $0x18] sm:$0xff]
  %v768 = vsel %vm173, %v758, 0
  %770 = vmatprep.subr.mxu0 0.0
  %771 = vmatpush1.msra.mxu0 0.0
  %772 = vmatprep.subr.mxu0 0.0
  %773 = vmatpush1.msra.mxu0 0.0
  %774 = vmatprep.subr.mxu0 0.0
  %775 = vmatpush1.msra.mxu0 0.0
  %776 = vmatprep.subr.mxu0 0.0
  %777 = vmatpush1.msra.mxu0 0.0
  %778 = vmatprep.subr.mxu0 0.0
  %779 = vmatpush1.msra.mxu0 0.0
  %780 = vmatprep.subr.mxu0 0.0
  %781 = vmatpush1.msra.mxu0 0.0
  %782 = vmatprep.subr.mxu0 0.0
  %783 = vmatpush1.msra.mxu0 0.0
  %784 = vmatprep.subr.mxu0 0.0
  %785 = vmatpush1.msra.mxu0 0.0
  %786 = vmatprep.subr.mxu0 0.0
  %787 = vmatpush1.msra.mxu0 0.0
  %788 = vmatprep.subr.mxu0 0.0
  %789 = vmatpush1.msra.mxu0 0.0
  %790 = vmatprep.subr.mxu0 0.0
  %791 = vmatpush1.msra.mxu0 0.0
  %792 = vmatprep.subr.mxu0 0.0
  %793 = vmatpush1.msra.mxu0 0.0
  %794 = vmatprep.subr.mxu0 0.0
  %795 = vmatpush1.msra.mxu0 %v766
  %796 = vmatprep.subr.mxu0 0.0
  %797 = vmatpush1.msra.mxu0 %v765
  %798 = vmatprep.subr.mxu0 0.0
  %799 = vmatpush1.msra.mxu0 %v764
  %800 = vmatprep.subr.mxu0 0.0
  %801 = vmatpush1.msra.mxu0 %v763
  %802 = vmatprep.subr.mxu0 0.0
  %803 = vmatpush2.msra.mxu0 0.0
  %804 = vmatprep.subr.mxu0 0.0
  %805 = vmatpush2.msra.mxu0 0.0
  %806 = vmatprep.subr.mxu0 0.0
  %807 = vmatpush2.msra.mxu0 0.0
  %808 = vmatprep.subr.mxu0 0.0
  %809 = vmatpush2.msra.mxu0 0.0
  %810 = vmatprep.subr.mxu0 0.0
  %811 = vmatpush2.msra.mxu0 0.0
  %812 = vmatprep.subr.mxu0 0.0
  %813 = vmatpush2.msra.mxu0 0.0
  %814 = vmatprep.subr.mxu0 0.0
  %815 = vmatpush2.msra.mxu0 0.0
  %816 = vmatprep.subr.mxu0 0.0
  %817 = vmatpush2.msra.mxu0 0.0
  %818 = vmatprep.subr.mxu0 0.0
  %819 = vmatpush2.msra.mxu0 0.0
  %820 = vmatprep.subr.mxu0 0.0
  %821 = vmatpush2.msra.mxu0 0.0
  %822 = vmatprep.subr.mxu0 0.0
  %823 = vmatpush2.msra.mxu0 0.0
  %824 = vmatprep.subr.mxu0 0.0
  %825 = vmatpush2.msra.mxu0 0.0
  %826 = vmatprep.subr.mxu0 0.0
  %827 = vmatpush2.msra.mxu0 0.0
  %828 = vmatprep.subr.mxu0 0.0
  %829 = vmatpush2.msra.mxu0 0.0
  %830 = vmatprep.subr.mxu0 0.0
  %831 = vmatpush2.msra.mxu0 0.0
  %832 = vmatprep.subr.mxu0 0.0
  %833 = vmatpush2.msra.mxu0 0.0
  %834 = vmatprep.mubr.f32.mxu0 0.0
  %835 = vmatmul.mubr.f32.gmra.mxu0 %v768
  %v836 = vpop.f32.mrf.mxu0
  %v837 = vadd.f32 0.0, %v836
  %v838 = vpop.f32.mrf.mxu0
  %839 = vdwg.mxu0
  %v840 = vadd.f32 %v762, %v837
  %v841 = vtanh.pop %v840
  %s842 = scalar_lea.vmem [#allocation3], 56
  %843 = vst.msk [vmem:[%s842] sm:$0xff] %vm173, %v841
  %v844 = vld [vmem:[#allocation3] sm:$0xff]
  %v845 = vld [vmem:[#allocation3 + $0x8] sm:$0xff]
  %v846 = vld [vmem:[#allocation3 + $0x10] sm:$0xff]
  %v847 = vld [vmem:[#allocation3 + $0x18] sm:$0xff]
  %v848 = vld [vmem:[#allocation3 + $0x20] sm:$0xff]
  %v849 = vld [vmem:[#allocation3 + $0x28] sm:$0xff]
  %v850 = vld [vmem:[#allocation3 + $0x30] sm:$0xff]
  %v851 = vld [vmem:[#allocation3 + $0x38] sm:$0xff]
  %v852 = vld [vmem:[%s4] sm:$0xff]
  %v853 = vld [vmem:[%s4 + $0x8] sm:$0xff]
  %v854 = vld [vmem:[%s4 + $0x10] sm:$0xff]
  %v855 = vld [vmem:[%s4 + $0x18] sm:$0xff]
  %v856 = vld [vmem:[%s5] sm:$0x1]
  %v858 = vlaneseq
  %v859 = vshrl.u32 %v858, 7
  %v860 = vsub.s32 0, %v859
  %v861 = vrot.slane %v856, %v860
  %v864 = vsel %vm173, %v844, 0
  %v867 = vsel %vm173, %v845, 0
  %v870 = vsel %vm173, %v846, 0
  %v873 = vsel %vm173, %v847, 0
  %v876 = vsel %vm173, %v848, 0
  %v879 = vsel %vm173, %v849, 0
  %v882 = vsel %vm173, %v850, 0
  %v885 = vsel %vm173, %v851, 0
  %887 = vmatprep.subr.mxu0 0.0
  %888 = vmatpush1.msra.mxu0 0.0
  %889 = vmatprep.subr.mxu0 0.0
  %890 = vmatpush1.msra.mxu0 0.0
  %891 = vmatprep.subr.mxu0 0.0
  %892 = vmatpush1.msra.mxu0 0.0
  %893 = vmatprep.subr.mxu0 0.0
  %894 = vmatpush1.msra.mxu0 0.0
  %895 = vmatprep.subr.mxu0 0.0
  %896 = vmatpush1.msra.mxu0 0.0
  %897 = vmatprep.subr.mxu0 0.0
  %898 = vmatpush1.msra.mxu0 0.0
  %899 = vmatprep.subr.mxu0 0.0
  %900 = vmatpush1.msra.mxu0 0.0
  %901 = vmatprep.subr.mxu0 0.0
  %902 = vmatpush1.msra.mxu0 0.0
  %903 = vmatprep.subr.mxu0 0.0
  %904 = vmatpush1.msra.mxu0 0.0
  %905 = vmatprep.subr.mxu0 0.0
  %906 = vmatpush1.msra.mxu0 0.0
  %907 = vmatprep.subr.mxu0 0.0
  %908 = vmatpush1.msra.mxu0 0.0
  %909 = vmatprep.subr.mxu0 0.0
  %910 = vmatpush1.msra.mxu0 0.0
  %911 = vmatprep.subr.mxu0 0.0
  %912 = vmatpush1.msra.mxu0 %v855
  %913 = vmatprep.subr.mxu0 0.0
  %914 = vmatpush1.msra.mxu0 %v854
  %915 = vmatprep.subr.mxu0 0.0
  %916 = vmatpush1.msra.mxu0 %v853
  %917 = vmatprep.subr.mxu0 0.0
  %918 = vmatpush1.msra.mxu0 %v852
  %919 = vmatprep.subr.mxu0 0.0
  %920 = vmatpush2.msra.mxu0 0.0
  %921 = vmatprep.subr.mxu0 0.0
  %922 = vmatpush2.msra.mxu0 0.0
  %923 = vmatprep.subr.mxu0 0.0
  %924 = vmatpush2.msra.mxu0 0.0
  %925 = vmatprep.subr.mxu0 0.0
  %926 = vmatpush2.msra.mxu0 0.0
  %927 = vmatprep.subr.mxu0 0.0
  %928 = vmatpush2.msra.mxu0 0.0
  %929 = vmatprep.subr.mxu0 0.0
  %930 = vmatpush2.msra.mxu0 0.0
  %931 = vmatprep.subr.mxu0 0.0
  %932 = vmatpush2.msra.mxu0 0.0
  %933 = vmatprep.subr.mxu0 0.0
  %934 = vmatpush2.msra.mxu0 0.0
  %935 = vmatprep.subr.mxu0 0.0
  %936 = vmatpush2.msra.mxu0 0.0
  %937 = vmatprep.subr.mxu0 0.0
  %938 = vmatpush2.msra.mxu0 0.0
  %939 = vmatprep.subr.mxu0 0.0
  %940 = vmatpush2.msra.mxu0 0.0
  %941 = vmatprep.subr.mxu0 0.0
  %942 = vmatpush2.msra.mxu0 0.0
  %943 = vmatprep.subr.mxu0 0.0
  %944 = vmatpush2.msra.mxu0 0.0
  %945 = vmatprep.subr.mxu0 0.0
  %946 = vmatpush2.msra.mxu0 0.0
  %947 = vmatprep.subr.mxu0 0.0
  %948 = vmatpush2.msra.mxu0 0.0
  %949 = vmatprep.subr.mxu0 0.0
  %950 = vmatpush2.msra.mxu0 0.0
  %951 = vmatprep.mubr.f32.mxu0 0.0
  %952 = vmatmul.mubr.f32.gmra.mxu0 %v864
  %v953 = vpop.f32.mrf.mxu0
  %v954 = vadd.f32 %v861, %v953
  %v955 = vpop.f32.mrf.mxu0
  %956 = vmatprep.mubr.f32.mxu0 0.0
  %957 = vmatmul.mubr.f32.gmra.mxu0 %v867
  %v958 = vpop.f32.mrf.mxu0
  %v959 = vadd.f32 %v861, %v958
  %v960 = vpop.f32.mrf.mxu0
  %961 = vmatprep.mubr.f32.mxu0 0.0
  %962 = vmatmul.mubr.f32.gmra.mxu0 %v870
  %v963 = vpop.f32.mrf.mxu0
  %v964 = vadd.f32 %v861, %v963
  %v965 = vpop.f32.mrf.mxu0
  %966 = vmatprep.mubr.f32.mxu0 0.0
  %967 = vmatmul.mubr.f32.gmra.mxu0 %v873
  %v968 = vpop.f32.mrf.mxu0
  %v969 = vadd.f32 %v861, %v968
  %v970 = vpop.f32.mrf.mxu0
  %971 = vmatprep.mubr.f32.mxu0 0.0
  %972 = vmatmul.mubr.f32.gmra.mxu0 %v876
  %v973 = vpop.f32.mrf.mxu0
  %v974 = vadd.f32 %v861, %v973
  %v975 = vpop.f32.mrf.mxu0
  %976 = vmatprep.mubr.f32.mxu0 0.0
  %977 = vmatmul.mubr.f32.gmra.mxu0 %v879
  %v978 = vpop.f32.mrf.mxu0
  %v979 = vadd.f32 %v861, %v978
  %v980 = vpop.f32.mrf.mxu0
  %981 = vmatprep.mubr.f32.mxu0 0.0
  %982 = vmatmul.mubr.f32.gmra.mxu0 %v882
  %v983 = vpop.f32.mrf.mxu0
  %v984 = vadd.f32 %v861, %v983
  %v985 = vpop.f32.mrf.mxu0
  %986 = vmatprep.mubr.f32.mxu0 0.0
  %987 = vmatmul.mubr.f32.gmra.mxu0 %v885
  %v988 = vpop.f32.mrf.mxu0
  %v989 = vadd.f32 %v861, %v988
  %v990 = vpop.f32.mrf.mxu0
  %991 = vdwg.mxu0
  %992 = vst.msk [vmem:[%s6] sm:$0xff] %vm39, %v954
  %993 = vst.msk [vmem:[%s6 + $0x8] sm:$0xff] %vm39, %v959
  %994 = vst.msk [vmem:[%s6 + $0x10] sm:$0xff] %vm39, %v964
  %995 = vst.msk [vmem:[%s6 + $0x18] sm:$0xff] %vm39, %v969
  %996 = vst.msk [vmem:[%s6 + $0x20] sm:$0xff] %vm39, %v974
  %997 = vst.msk [vmem:[%s6 + $0x28] sm:$0xff] %vm39, %v979
  %998 = vst.msk [vmem:[%s6 + $0x30] sm:$0xff] %vm39, %v984
  %999 = vst.msk [vmem:[%s6 + $0x38] sm:$0xff] %vm39, %v989
  // Predicated region
  $region26: #{df_model_forward.1} parent=0 // pred_check
    _
  $region27: #{df_model_forward.1} parent=0 // pred_check_branch
    %1001 = sbr.rel (0) target = $region29
  $region28: #{df_model_forward.1} parent=0 // pred_region
    _
  $region29: #{df_model_forward.1} parent=0 // pred_fallthru
    _
  // Predicated region
  $region30: #{df_model_forward.1} parent=0 // pred_check
    _
  $region31: #{df_model_forward.1} parent=0 // pred_check_branch
    %1003 = sbr.rel (0) target = $region33
  $region32: #{df_model_forward.1} parent=0 // pred_region
    _
  $region33: #{df_model_forward.1} parent=0 // pred_fallthru
    _

</llo_original>
